<compile_context>
chip_gen: v7x
topology: tpu7x:2x2x1
jax: 0.10.0
libtpu: 0.0.40
codegen_flags: <defaults>
</compile_context>

<pallas_src>
import jax
import jax.numpy as jnp
from jax.experimental import pallas as pl
from jax.experimental.pallas import tpu as pltpu


def _gating_kernel(x_ref, w_ref, b_ref, u_ref, o_ref):
    # x: (TB, D), w: (D, E), b: (1, E), u: (TB, E), o: (TB, E)
    x = x_ref[...]
    w = w_ref[...]
    b = b_ref[...].astype(jnp.float32)
    u = u_ref[...].astype(jnp.float32)

    # MXU matmul with f32 accumulation, then elementwise bias / uncertainty.
    logits = jnp.dot(x, w, preferred_element_type=jnp.float32) + b - u  # (TB, E)

    # Numerically-stable softmax over the (real, unpadded) expert axis.
    m = jnp.max(logits, axis=-1, keepdims=True)
    e = jnp.exp(logits - m)
    denom = jnp.sum(e, axis=-1, keepdims=True)
    # Exact divide: probabilities are consumed directly downstream and the
    # kernel is HBM-bound, so the extra cost is negligible.
    o_ref[...] = (e / denom).astype(o_ref.dtype)


def _compute_batch_tile(B, D, E, x_itemsize, budget_bytes):
    """D-aware batch tile that fits the (double-buffered) VMEM budget."""
    if B <= 8:
        return B
    # Streaming bytes per row (x, uncertainties, out; each double-buffered).
    per_row = 2 * (D * x_itemsize + E * 4 + E * 4)
    # Resident W + bias (assume double-buffered by the pipeline to be safe).
    resident = 2 * (D * E * 4 + E * 4)
    avail = max(budget_bytes - resident, 8 * per_row)
    tb = max(8, (int(avail // per_row) // 8) * 8)
    tb = min(tb, 2048)  # keep step granularity reasonable
    if B >= 16:
        # Guarantee >= 2 grid steps so v7x's two TensorCores both get work.
        half = max(8, (((B + 1) // 2 + 7) // 8) * 8)
        tb = min(tb, half)
    return min(tb, max(8, (B // 8) * 8))


def gating_network(x, weight_t, bias, uncertainties, *, vmem_budget_bytes=36 * 1024 * 1024):
    """x: (B, D), weight_t: (D, E), bias: (E,), uncertainties: (B, E).

    Returns softmax(x @ weight_t + bias - uncertainties, axis=1), shape (B, E),
    in x's dtype.
    """
    B, D = x.shape
    E = weight_t.shape[1]

    bias2d = bias.reshape(1, E)  # metadata-only reshape; params otherwise untouched

    TB = _compute_batch_tile(B, D, E, jnp.dtype(x.dtype).itemsize, vmem_budget_bytes)
    grid = (pl.cdiv(B, TB),)

    out_dtype = x.dtype
    cost = pl.CostEstimate(
        flops=2 * B * D * E,
        transcendentals=B * E,
        bytes_accessed=(
            B * D * jnp.dtype(x.dtype).itemsize
            + D * E * jnp.dtype(weight_t.dtype).itemsize
            + E * jnp.dtype(bias.dtype).itemsize
            + B * E * jnp.dtype(uncertainties.dtype).itemsize
            + B * E * jnp.dtype(out_dtype).itemsize
        ),
    )

    return pl.pallas_call(
        _gating_kernel,
        out_shape=jax.ShapeDtypeStruct((B, E), out_dtype),
        grid=grid,
        in_specs=[
            pl.BlockSpec((TB, D), lambda i: (i, 0)),   # x: streamed over batch
            pl.BlockSpec((D, E), lambda i: (0, 0)),    # W: resident
            pl.BlockSpec((1, E), lambda i: (0, 0)),    # bias: resident
            pl.BlockSpec((TB, E), lambda i: (i, 0)),   # uncertainties: streamed
        ],
        out_specs=pl.BlockSpec((TB, E), lambda i: (i, 0)),
        compiler_params=pltpu.CompilerParams(
            dimension_semantics=("parallel",),      # v7x megacore splits batch tiles
            vmem_limit_bytes=48 * 1024 * 1024,      # <= v7x 64 MiB physical; ample on v5e/v6e
        ),
        cost_estimate=cost,
    )(x, weight_t, bias2d, uncertainties)


def _reference(x, weight_t, bias, uncertainties):
    logits = x @ weight_t + bias[None, :] - uncertainties
    return jax.nn.softmax(logits, axis=1)


if __name__ == "__main__":
    key = jax.random.PRNGKey(0)
    k_x, k_w, k_b, k_u = jax.random.split(key, 4)

    B, in_dim, n_experts = 8, 32, 4

    x = jax.random.normal(k_x, (B, in_dim), dtype=jnp.float32)
    # Parameters for nn.Linear(in_dim, n_experts): PyTorch weight is
    # (n_experts, in_dim); we store the transpose (in_dim, n_experts).
    bound = 1.0 / (in_dim ** 0.5)
    weight_t = jax.random.uniform(
        k_w, (in_dim, n_experts), minval=-bound, maxval=bound, dtype=jnp.float32
    )
    bias = jax.random.uniform(
        k_b, (n_experts,), minval=-bound, maxval=bound, dtype=jnp.float32
    )
    uncertainties = jax.random.uniform(k_u, (B, n_experts), dtype=jnp.float32)

    out = gating_network(x, weight_t, bias, uncertainties)
    out = jax.block_until_ready(out)

    ref = _reference(x, weight_t, bias, uncertainties)
    assert out.shape == (B, n_experts)
    assert jnp.allclose(out, ref, atol=1e-5, rtol=1e-5), "mismatch vs reference"
    assert jnp.allclose(jnp.sum(out, axis=1), 1.0, atol=1e-5), "rows must sum to 1"

    print("KERNEL_OK")
</pallas_src>

<mosaic_0001>
module attributes {stable_mosaic.version = 11 : i64} {
  func.func @_gating_kernel(%arg0: i32, %arg1: memref<8x32xf32, #tpu.memory_space<vmem>>, %arg2: memref<32x4xf32, #tpu.memory_space<vmem>>, %arg3: memref<1x4xf32, #tpu.memory_space<vmem>>, %arg4: memref<8x4xf32, #tpu.memory_space<vmem>>, %arg5: memref<8x4xf32, #tpu.memory_space<vmem>>) attributes {dimension_semantics = [#tpu.dimension_semantics<parallel>], iteration_bounds = array<i64: 1>, scalar_prefetch = 0 : i64, scratch_operands = 0 : i64, tpu.core_type = #tpu.core_type<tc>, window_params = [{transform_indices = @transform_0, window_bounds = array<i64: 8, 32>}, {pipeline_mode = #tpu.pipeline_mode<synchronous>, transform_indices = @transform_1, window_bounds = array<i64: 32, 4>}, {pipeline_mode = #tpu.pipeline_mode<synchronous>, transform_indices = @transform_2, window_bounds = array<i64: 1, 4>}, {transform_indices = @transform_3, window_bounds = array<i64: 8, 4>}, {transform_indices = @transform_4, window_bounds = array<i64: 8, 4>}]} {
    %c0 = arith.constant 0 : index
    %c0_0 = arith.constant 0 : index
    %0 = vector.load %arg1[%c0, %c0_0] : memref<8x32xf32, #tpu.memory_space<vmem>>, vector<8x32xf32>
    %c0_1 = arith.constant 0 : index
    %c0_2 = arith.constant 0 : index
    %1 = vector.load %arg2[%c0_1, %c0_2] : memref<32x4xf32, #tpu.memory_space<vmem>>, vector<32x4xf32>
    %c0_3 = arith.constant 0 : index
    %c0_4 = arith.constant 0 : index
    %2 = vector.load %arg3[%c0_3, %c0_4] : memref<1x4xf32, #tpu.memory_space<vmem>>, vector<1x4xf32>
    %c0_5 = arith.constant 0 : index
    %c0_6 = arith.constant 0 : index
    %3 = vector.load %arg4[%c0_5, %c0_6] : memref<8x4xf32, #tpu.memory_space<vmem>>, vector<8x4xf32>
    %cst = arith.constant dense<0.000000e+00> : vector<8x4xf32>
    %4 = tpu.matmul %0, %1, %cst {dimension_numbers = #tpu.dot_dimension_numbers<[1], [0], [0], [1], [0, 0, 1, 1], [], []>} : vector<8x32xf32>, vector<32x4xf32>, vector<8x4xf32> -> vector<8x4xf32>
    %5 = vector.broadcast %2 : vector<1x4xf32> to vector<8x4xf32>
    %6 = arith.addf %4, %5 : vector<8x4xf32>
    %7 = arith.subf %6, %3 : vector<8x4xf32>
    %cst_7 = arith.constant dense<0xFF800000> : vector<8xf32>
    %8 = vector.multi_reduction <maximumf>, %7, %cst_7 [1] : vector<8x4xf32> to vector<8xf32>
    %9 = vector.shape_cast %8 : vector<8xf32> to vector<8x1xf32>
    %10 = vector.broadcast %9 : vector<8x1xf32> to vector<8x4xf32>
    %11 = arith.subf %7, %10 : vector<8x4xf32>
    %12 = math.exp %11 : vector<8x4xf32>
    %cst_8 = arith.constant dense<0.000000e+00> : vector<8xf32>
    %13 = vector.multi_reduction <add>, %12, %cst_8 [1] : vector<8x4xf32> to vector<8xf32>
    %14 = vector.shape_cast %13 : vector<8xf32> to vector<8x1xf32>
    %15 = vector.broadcast %14 : vector<8x1xf32> to vector<8x4xf32>
    %16 = arith.divf %12, %15 : vector<8x4xf32>
    %c0_9 = arith.constant 0 : index
    %c0_10 = arith.constant 0 : index
    %17 = vector.load %arg5[%c0_9, %c0_10] : memref<8x4xf32, #tpu.memory_space<vmem>>, vector<8x4xf32>
    tpu.vector_store %arg5[%c0_9, %c0_10], %16 {strides = array<i32>} : memref<8x4xf32, #tpu.memory_space<vmem>>, vector<8x4xf32>,
    return
  }
  func.func @transform_0(%arg0: i32) -> (i32, i32) {
    %c0_i32 = arith.constant 0 : i32
    %c0_i32_0 = arith.constant 0 : i32
    return %arg0, %c0_i32 : i32, i32
  }
  func.func @transform_1(%arg0: i32) -> (i32, i32) {
    %c0_i32 = arith.constant 0 : i32
    %c0_i32_0 = arith.constant 0 : i32
    %c0_i32_1 = arith.constant 0 : i32
    return %c0_i32, %c0_i32_0 : i32, i32
  }
  func.func @transform_2(%arg0: i32) -> (i32, i32) {
    %c0_i32 = arith.constant 0 : i32
    %c0_i32_0 = arith.constant 0 : i32
    %c0_i32_1 = arith.constant 0 : i32
    return %c0_i32, %c0_i32_0 : i32, i32
  }
  func.func @transform_3(%arg0: i32) -> (i32, i32) {
    %c0_i32 = arith.constant 0 : i32
    %c0_i32_0 = arith.constant 0 : i32
    return %arg0, %c0_i32 : i32, i32
  }
  func.func @transform_4(%arg0: i32) -> (i32, i32) {
    %c0_i32 = arith.constant 0 : i32
    %c0_i32_0 = arith.constant 0 : i32
    return %arg0, %c0_i32 : i32, i32
  }
}

</mosaic_0001>

<llo_original>
// kernel: tpu_custom_call.1
$region0: #{tpu_custom_call.1}
  #allocation0 [shape = 'u32[]', space=smem, size = 0x4, offset = 0x4, fixed_abs, tag = 'smem constant byte address 0x4 - core index']
  #allocation1 [shape = 'u32[144,128]{1,0:T(1,128)}', space=vmem, size = 0x12000, scoped, tag = 'internal scratch']
  %s0 = inlined_call_operand.vmem [shape: f32[8,32], index: 0, kind: input, shape index: {}]
  %s1 = inlined_call_operand.vmem [shape: f32[32,4], index: 1, kind: input, shape index: {}]
  %s2 = inlined_call_operand.vmem [shape: f32[1,4], index: 2, kind: input, shape index: {}]
  %s3 = inlined_call_operand.vmem [shape: f32[8,4], index: 3, kind: input, shape index: {}]
  %s4 = inlined_call_operand.vmem [shape: f32[8,4], index: 4, kind: output, shape index: {}]
  %s5 = sld [smem:[#allocation0]]
  $region26: #{tpu_custom_call.1} parent=0
    _
  %s7 = ssub.s32 1, %s5
  %s8 = scalar_select 0, %s7, %s5
  // Predicated region
  $region2: #{tpu_custom_call.1} parent=0 // pred_check
    _
  $region3: #{tpu_custom_call.1} parent=0 // pred_check_branch
    %10 = sbr.rel (0) target = $region5
  $region4: #{tpu_custom_call.1} parent=0 // pred_region
    _
  $region5: #{tpu_custom_call.1} parent=0 // pred_fallthru
    _
  // Predicated region
  $region6: #{tpu_custom_call.1} parent=0 // pred_check
    _
  $region7: #{tpu_custom_call.1} parent=0 // pred_check_branch
    %12 = sbr.rel (0) target = $region9
  $region8: #{tpu_custom_call.1} parent=0 // pred_region
    _
  $region9: #{tpu_custom_call.1} parent=0 // pred_fallthru
    _
  // Predicated region
  $region10: #{tpu_custom_call.1} parent=0 // pred_check
    _
  $region11: #{tpu_custom_call.1} parent=0 // pred_check_branch
    %14 = sbr.rel (0) target = $region13
  $region12: #{tpu_custom_call.1} parent=0 // pred_region
    _
  $region13: #{tpu_custom_call.1} parent=0 // pred_fallthru
    _
  // Predicated region
  $region14: #{tpu_custom_call.1} parent=0 // pred_check
    _
  $region15: #{tpu_custom_call.1} parent=0 // pred_check_branch
    %16 = sbr.rel (0) target = $region17
  $region16: #{tpu_custom_call.1} parent=0 // pred_region
    _
  $region17: #{tpu_custom_call.1} parent=0 // pred_fallthru
    _
  %v17 = vld [vmem:[%s0] sm:$0xff]
  %v18 = vld [vmem:[%s1] sm:$0xff]
  %v19 = vld [vmem:[%s1 + $0x8] sm:$0xff]
  %v20 = vld [vmem:[%s1 + $0x10] sm:$0xff]
  %v21 = vld [vmem:[%s1 + $0x18] sm:$0xff]
  %v22 = vld [vmem:[%s2] sm:$0x1]
  %v23 = vld [vmem:[%s3] sm:$0xff]
  %v25 = vlaneseq
  %v26 = vshrl.u32 %v25, 7
  %v27 = vsub.s32 0, %v26
  %v28 = vrot.slane %v22, %v27
  %vm30 = vcmask 261120
  %v32 = vsel %vm30, %v17, 0
  %34 = vmatprep.subr.mxu0 0.0
  %35 = vmatpush1.msra.mxu0 %v18
  %36 = vmatprep.subr.mxu0 0.0
  %37 = vmatpush1.msra.mxu0 %v19
  %38 = vmatprep.subr.mxu0 0.0
  %39 = vmatpush1.msra.mxu0 %v20
  %40 = vmatprep.subr.mxu0 0.0
  %41 = vmatpush1.msra.mxu0 %v21
  %42 = vmatprep.subr.mxu0 0.0
  %43 = vmatpush1.msra.mxu0 0.0
  %44 = vmatprep.subr.mxu0 0.0
  %45 = vmatpush1.msra.mxu0 0.0
  %46 = vmatprep.subr.mxu0 0.0
  %47 = vmatpush1.msra.mxu0 0.0
  %48 = vmatprep.subr.mxu0 0.0
  %49 = vmatpush1.msra.mxu0 0.0
  %50 = vmatprep.subr.mxu0 0.0
  %51 = vmatpush1.msra.mxu0 0.0
  %52 = vmatprep.subr.mxu0 0.0
  %53 = vmatpush1.msra.mxu0 0.0
  %54 = vmatprep.subr.mxu0 0.0
  %55 = vmatpush1.msra.mxu0 0.0
  %56 = vmatprep.subr.mxu0 0.0
  %57 = vmatpush1.msra.mxu0 0.0
  %58 = vmatprep.subr.mxu0 0.0
  %59 = vmatpush1.msra.mxu0 0.0
  %60 = vmatprep.subr.mxu0 0.0
  %61 = vmatpush1.msra.mxu0 0.0
  %62 = vmatprep.subr.mxu0 0.0
  %63 = vmatpush1.msra.mxu0 0.0
  %64 = vmatprep.subr.mxu0 0.0
  %65 = vmatpush1.msra.mxu0 0.0
  %66 = vmatprep.subr.mxu0 0.0
  %67 = vmatpush1.msra.mxu0 0.0
  %68 = vmatprep.subr.mxu0 0.0
  %69 = vmatpush1.msra.mxu0 0.0
  %70 = vmatprep.subr.mxu0 0.0
  %71 = vmatpush1.msra.mxu0 0.0
  %72 = vmatprep.subr.mxu0 0.0
  %73 = vmatpush1.msra.mxu0 0.0
  %74 = vmatprep.subr.mxu0 0.0
  %75 = vmatpush1.msra.mxu0 0.0
  %76 = vmatprep.subr.mxu0 0.0
  %77 = vmatpush1.msra.mxu0 0.0
  %78 = vmatprep.subr.mxu0 0.0
  %79 = vmatpush1.msra.mxu0 0.0
  %80 = vmatprep.subr.mxu0 0.0
  %81 = vmatpush1.msra.mxu0 0.0
  %82 = vmatprep.subr.mxu0 0.0
  %83 = vmatpush1.msra.mxu0 0.0
  %84 = vmatprep.subr.mxu0 0.0
  %85 = vmatpush1.msra.mxu0 0.0
  %86 = vmatprep.subr.mxu0 0.0
  %87 = vmatpush1.msra.mxu0 0.0
  %88 = vmatprep.subr.mxu0 0.0
  %89 = vmatpush1.msra.mxu0 0.0
  %90 = vmatprep.subr.mxu0 0.0
  %91 = vmatpush1.msra.mxu0 0.0
  %92 = vmatprep.subr.mxu0 0.0
  %93 = vmatpush1.msra.mxu0 0.0
  %94 = vmatprep.subr.mxu0 0.0
  %95 = vmatpush1.msra.mxu0 0.0
  %96 = vmatprep.subr.mxu0 0.0
  %97 = vmatpush1.msra.mxu0 0.0
  %98 = vmatprep.mubr.f32.mxu0 0.0
  %99 = vmatmul.mubr.f32.gmra.mrb[0].mxu0 %v32
  %v100 = vpop.f32.mrb[0].mxu0
  %v101 = vadd.f32 %v28, %v100
  %v102 = vpop.f32.mrb[0].mxu0
  %103 = vdwg.mxu0
  %v104 = vsub.f32 %v101, %v23
  %vm105 = vcmask 31744
  %v106 = vsel %vm105, %v104, -inf
  %107 = vmax.xlane.f32.xlu0 %v106
  %v108 = vpop.xlane.xlu0 %107
  %v109 = vsub.f32 %v104, %v108
  %v110 = vmul.f32 %v109, 1.442695
  %v111 = vpow.pop %v110
  %v112 = vsel %vm105, %v111, 0.0
  %113 = vadd.xlane.f32.xlu0 %v112
  %v114 = vpop.xlane.xlu0 %113
  %v115 = vrcp.pop %v114
  %v116 = vmul.f32 %v111, %v115
  %117 = vst.msk [vmem:[%s4] sm:$0xff] %vm105, %v116
  // Predicated region
  $region18: #{tpu_custom_call.1} parent=0 // pred_check
    _
  $region19: #{tpu_custom_call.1} parent=0 // pred_check_branch
    %119 = sbr.rel (0) target = $region21
  $region20: #{tpu_custom_call.1} parent=0 // pred_region
    _
  $region21: #{tpu_custom_call.1} parent=0 // pred_fallthru
    _
  // Predicated region
  $region22: #{tpu_custom_call.1} parent=0 // pred_check
    _
  $region23: #{tpu_custom_call.1} parent=0 // pred_check_branch
    %121 = sbr.rel (0) target = $region25
  $region24: #{tpu_custom_call.1} parent=0 // pred_region
    _
  $region25: #{tpu_custom_call.1} parent=0 // pred_fallthru
    _

</llo_original>
